<compile_context>
chip_gen: v7x
topology: tpu7x:2x2x1
jax: 0.10.0
libtpu: 0.0.40
codegen_flags: <defaults>
</compile_context>

<pallas_src>
import jax
import jax.numpy as jnp
from jax.experimental import pallas as pl
from jax.experimental.pallas import tpu as pltpu


def _round_up(x, m):
    return ((x + m - 1) // m) * m


def _encoder_kernel(x_ref, w1_ref, b1_ref, w2_ref, b2_ref, w3_ref, b3_ref, o_ref):
    """Fused (fc1+BN1)+ReLU -> (fc2+BN2)+ReLU -> fc3 for one batch tile.

    Weights/biases arrive with BatchNorm already folded in; matmul inputs are
    low precision (bf16), accumulation and the elementwise epilogue stay f32.
    """
    h = jnp.dot(x_ref[...], w1_ref[...], preferred_element_type=jnp.float32)
    h = jnp.maximum(h + b1_ref[...], 0.0)
    # dropout (p=0.2) is identity in eval mode

    h = jnp.dot(h.astype(w2_ref.dtype), w2_ref[...],
                preferred_element_type=jnp.float32)
    h = jnp.maximum(h + b2_ref[...], 0.0)
    # dropout (p=0.2) is identity in eval mode

    out = jnp.dot(h.astype(w3_ref.dtype), w3_ref[...],
                  preferred_element_type=jnp.float32)
    o_ref[...] = (out + b3_ref[...]).astype(o_ref.dtype)


def molecular_encoder_forward(x, params, *, batch_tile=256,
                              compute_dtype=jnp.bfloat16):
    """x: (B, input_dim) float32. Returns (B, output_dim) float32."""
    (w1, b1, g1, beta1, rm1, rv1,
     w2, b2, g2, beta2, rm2, rv2,
     w3, b3) = params
    eps = 1e-5

    # ---- Fold BatchNorm (running stats) into the Linear layers (plain JAX glue).
    s1 = g1 / jnp.sqrt(rv1 + eps)
    t1 = beta1 - rm1 * s1
    s2 = g2 / jnp.sqrt(rv2 + eps)
    t2 = beta2 - rm2 * s2
    w1f = w1 * s1[None, :]
    b1f = b1 * s1 + t1
    w2f = w2 * s2[None, :]
    b2f = b2 * s2 + t2

    B, input_dim = x.shape
    hidden_dim = w1.shape[1]
    output_dim = w3.shape[1]

    # ---- Zero-pad the contraction dim (e.g. 300 -> 384) so fc1 is lane-aligned.
    k_pad = _round_up(input_dim, 128)
    if k_pad != input_dim:
        x = jnp.pad(x, ((0, 0), (0, k_pad - input_dim)))
        w1f = jnp.pad(w1f, ((0, k_pad - input_dim), (0, 0)))

    # ---- Batch tiling: big tiles to fill MXU rows; ragged batch padded + sliced.
    bt = min(batch_tile, _round_up(B, 8))
    b_pad = _round_up(B, bt)
    if b_pad != B:
        x = jnp.pad(x, ((0, b_pad - B), (0, 0)))

    # ---- Low-precision MXU operands, f32 biases.
    x_c = x.astype(compute_dtype)
    w1_c = w1f.astype(compute_dtype)
    w2_c = w2f.astype(compute_dtype)
    w3_c = w3.astype(compute_dtype)
    row = lambda v: v.reshape(1, -1).astype(jnp.float32)

    grid = (b_pad // bt,)

    def const_spec(m, n):
        # Constant index_map -> fetched once, resident across the grid.
        # TODO(synk): pipeline_mode=pl.Buffered(1) would halve their VMEM
        # reservation; left at the default for portability.
        return pl.BlockSpec((m, n), lambda i: (0, 0))

    flops = 2 * b_pad * (k_pad * hidden_dim
                         + hidden_dim * hidden_dim
                         + hidden_dim * output_dim)
    bytes_accessed = (x_c.size * 2
                      + (w1_c.size + w2_c.size + w3_c.size) * 2
                      + (b1f.size + b2f.size + b3.size) * 4
                      + b_pad * output_dim * 4)

    out = pl.pallas_call(
        _encoder_kernel,
        out_shape=jax.ShapeDtypeStruct((b_pad, output_dim), jnp.float32),
        grid_spec=pltpu.PrefetchScalarGridSpec(
            num_scalar_prefetch=0,
            grid=grid,
            in_specs=[
                pl.BlockSpec((bt, k_pad), lambda i: (i, 0)),  # x tile
                const_spec(k_pad, hidden_dim),                # w1 (BN folded)
                const_spec(1, hidden_dim),                    # b1 (BN folded)
                const_spec(hidden_dim, hidden_dim),           # w2 (BN folded)
                const_spec(1, hidden_dim),                    # b2 (BN folded)
                const_spec(hidden_dim, output_dim),           # w3
                const_spec(1, output_dim),                    # b3
            ],
            out_specs=pl.BlockSpec((bt, output_dim), lambda i: (i, 0)),
        ),
        compiler_params=pltpu.CompilerParams(
            dimension_semantics=("parallel",)),
        cost_estimate=pl.CostEstimate(
            flops=flops, transcendentals=0, bytes_accessed=bytes_accessed),
    )(x_c, w1_c, row(b1f), w2_c, row(b2f), w3_c, row(b3))

    return out[:B]


def init_params(key, input_dim=300, hidden_dim=256, output_dim=128):
    """Deterministic synthetic parameters matching MolecularEncoder.__init__ shapes."""
    ks = jax.random.split(key, 6)
    # Linear weights stored as (in, out) — i.e. PyTorch weight.T
    w1 = jax.random.normal(ks[0], (input_dim, hidden_dim), jnp.float32) * 0.02
    b1 = jax.random.normal(ks[1], (hidden_dim,), jnp.float32) * 0.02
    w2 = jax.random.normal(ks[2], (hidden_dim, hidden_dim), jnp.float32) * 0.02
    b2 = jax.random.normal(ks[3], (hidden_dim,), jnp.float32) * 0.02
    w3 = jax.random.normal(ks[4], (hidden_dim, output_dim), jnp.float32) * 0.02
    b3 = jax.random.normal(ks[5], (output_dim,), jnp.float32) * 0.02
    # BatchNorm1d params at fresh init: gamma=1, beta=0, running_mean=0, running_var=1
    g1 = jnp.ones((hidden_dim,), jnp.float32)
    beta1 = jnp.zeros((hidden_dim,), jnp.float32)
    rm1 = jnp.zeros((hidden_dim,), jnp.float32)
    rv1 = jnp.ones((hidden_dim,), jnp.float32)
    g2 = jnp.ones((hidden_dim,), jnp.float32)
    beta2 = jnp.zeros((hidden_dim,), jnp.float32)
    rm2 = jnp.zeros((hidden_dim,), jnp.float32)
    rv2 = jnp.ones((hidden_dim,), jnp.float32)
    return (w1, b1, g1, beta1, rm1, rv1,
            w2, b2, g2, beta2, rm2, rv2,
            w3, b3)


def reference_forward(x, params):
    """Pure-JAX f32 reference (eval-mode PyTorch semantics)."""
    (w1, b1, g1, beta1, rm1, rv1,
     w2, b2, g2, beta2, rm2, rv2,
     w3, b3) = params
    eps = 1e-5
    h = x @ w1 + b1
    h = (h - rm1) / jnp.sqrt(rv1 + eps) * g1 + beta1
    h = jnp.maximum(h, 0.0)
    h = h @ w2 + b2
    h = (h - rm2) / jnp.sqrt(rv2 + eps) * g2 + beta2
    h = jnp.maximum(h, 0.0)
    return h @ w3 + b3


if __name__ == "__main__":
    key = jax.random.PRNGKey(0)
    k_params, k_x1, k_x2 = jax.random.split(key, 3)

    input_dim, hidden_dim, output_dim = 300, 256, 128
    params = init_params(k_params, input_dim, hidden_dim, output_dim)

    # Small, module-consistent shapes.
    x1 = jax.random.normal(k_x1, (8, input_dim), jnp.float32)
    out1 = jax.block_until_ready(molecular_encoder_forward(x1, params))
    ref1 = reference_forward(x1, params)
    assert out1.shape == (8, output_dim)
    # bf16 matmul inputs vs f32 reference -> loosened tolerance.
    assert jnp.allclose(out1, ref1, atol=3e-3, rtol=3e-2), "mismatch (batch=8)"

    # Ragged batch exercises the padded-last-tile path.
    x2 = jax.random.normal(k_x2, (13, input_dim), jnp.float32)
    out2 = jax.block_until_ready(molecular_encoder_forward(x2, params))
    ref2 = reference_forward(x2, params)
    assert out2.shape == (13, output_dim)
    assert jnp.allclose(out2, ref2, atol=3e-3, rtol=3e-2), "mismatch (batch=13)"

    print("KERNEL_OK")
</pallas_src>

<mosaic_0001>
module attributes {stable_mosaic.version = 11 : i64} {
  func.func @_encoder_kernel(%arg0: i32, %arg1: memref<8x384xbf16, #tpu.memory_space<vmem>>, %arg2: memref<384x256xbf16, #tpu.memory_space<vmem>>, %arg3: memref<1x256xf32, #tpu.memory_space<vmem>>, %arg4: memref<256x256xbf16, #tpu.memory_space<vmem>>, %arg5: memref<1x256xf32, #tpu.memory_space<vmem>>, %arg6: memref<256x128xbf16, #tpu.memory_space<vmem>>, %arg7: memref<1x128xf32, #tpu.memory_space<vmem>>, %arg8: memref<8x128xf32, #tpu.memory_space<vmem>>) attributes {dimension_semantics = [#tpu.dimension_semantics<parallel>], iteration_bounds = array<i64: 1>, scalar_prefetch = 0 : i64, scratch_operands = 0 : i64, tpu.core_type = #tpu.core_type<tc>, window_params = [{transform_indices = @transform_0, window_bounds = array<i64: 8, 384>}, {pipeline_mode = #tpu.pipeline_mode<synchronous>, transform_indices = @transform_1, window_bounds = array<i64: 384, 256>}, {pipeline_mode = #tpu.pipeline_mode<synchronous>, transform_indices = @transform_2, window_bounds = array<i64: 1, 256>}, {pipeline_mode = #tpu.pipeline_mode<synchronous>, transform_indices = @transform_3, window_bounds = array<i64: 256, 256>}, {pipeline_mode = #tpu.pipeline_mode<synchronous>, transform_indices = @transform_4, window_bounds = array<i64: 1, 256>}, {pipeline_mode = #tpu.pipeline_mode<synchronous>, transform_indices = @transform_5, window_bounds = array<i64: 256, 128>}, {pipeline_mode = #tpu.pipeline_mode<synchronous>, transform_indices = @transform_6, window_bounds = array<i64: 1, 128>}, {transform_indices = @transform_7, window_bounds = array<i64: 8, 128>}]} {
    %c0 = arith.constant 0 : index
    %c0_0 = arith.constant 0 : index
    %0 = vector.load %arg1[%c0, %c0_0] : memref<8x384xbf16, #tpu.memory_space<vmem>>, vector<8x384xbf16>
    %c0_1 = arith.constant 0 : index
    %c0_2 = arith.constant 0 : index
    %1 = vector.load %arg2[%c0_1, %c0_2] : memref<384x256xbf16, #tpu.memory_space<vmem>>, vector<384x256xbf16>
    %cst = arith.constant dense<0.000000e+00> : vector<8x256xf32>
    %2 = tpu.matmul %0, %1, %cst {dimension_numbers = #tpu.dot_dimension_numbers<[1], [0], [0], [1], [0, 0, 1, 1], [], []>} : vector<8x384xbf16>, vector<384x256xbf16>, vector<8x256xf32> -> vector<8x256xf32>
    %c0_3 = arith.constant 0 : index
    %c0_4 = arith.constant 0 : index
    %3 = vector.load %arg3[%c0_3, %c0_4] : memref<1x256xf32, #tpu.memory_space<vmem>>, vector<1x256xf32>
    %4 = vector.broadcast %3 : vector<1x256xf32> to vector<8x256xf32>
    %5 = arith.addf %2, %4 : vector<8x256xf32>
    %cst_5 = arith.constant 0.000000e+00 : f32
    %6 = vector.broadcast %cst_5 : f32 to vector<8x256xf32>
    %7 = arith.maximumf %5, %6 : vector<8x256xf32>
    %8 = arith.truncf %7 : vector<8x256xf32> to vector<8x256xbf16>
    %c0_6 = arith.constant 0 : index
    %c0_7 = arith.constant 0 : index
    %9 = vector.load %arg4[%c0_6, %c0_7] : memref<256x256xbf16, #tpu.memory_space<vmem>>, vector<256x256xbf16>
    %cst_8 = arith.constant dense<0.000000e+00> : vector<8x256xf32>
    %10 = tpu.matmul %8, %9, %cst_8 {dimension_numbers = #tpu.dot_dimension_numbers<[1], [0], [0], [1], [0, 0, 1, 1], [], []>} : vector<8x256xbf16>, vector<256x256xbf16>, vector<8x256xf32> -> vector<8x256xf32>
    %c0_9 = arith.constant 0 : index
    %c0_10 = arith.constant 0 : index
    %11 = vector.load %arg5[%c0_9, %c0_10] : memref<1x256xf32, #tpu.memory_space<vmem>>, vector<1x256xf32>
    %12 = vector.broadcast %11 : vector<1x256xf32> to vector<8x256xf32>
    %13 = arith.addf %10, %12 : vector<8x256xf32>
    %cst_11 = arith.constant 0.000000e+00 : f32
    %14 = vector.broadcast %cst_11 : f32 to vector<8x256xf32>
    %15 = arith.maximumf %13, %14 : vector<8x256xf32>
    %16 = arith.truncf %15 : vector<8x256xf32> to vector<8x256xbf16>
    %c0_12 = arith.constant 0 : index
    %c0_13 = arith.constant 0 : index
    %17 = vector.load %arg6[%c0_12, %c0_13] : memref<256x128xbf16, #tpu.memory_space<vmem>>, vector<256x128xbf16>
    %cst_14 = arith.constant dense<0.000000e+00> : vector<8x128xf32>
    %18 = tpu.matmul %16, %17, %cst_14 {dimension_numbers = #tpu.dot_dimension_numbers<[1], [0], [0], [1], [0, 0, 1, 1], [], []>} : vector<8x256xbf16>, vector<256x128xbf16>, vector<8x128xf32> -> vector<8x128xf32>
    %c0_15 = arith.constant 0 : index
    %c0_16 = arith.constant 0 : index
    %19 = vector.load %arg7[%c0_15, %c0_16] : memref<1x128xf32, #tpu.memory_space<vmem>>, vector<1x128xf32>
    %20 = vector.broadcast %19 : vector<1x128xf32> to vector<8x128xf32>
    %21 = arith.addf %18, %20 : vector<8x128xf32>
    %c0_17 = arith.constant 0 : index
    %c0_18 = arith.constant 0 : index
    %22 = vector.load %arg8[%c0_17, %c0_18] : memref<8x128xf32, #tpu.memory_space<vmem>>, vector<8x128xf32>
    tpu.vector_store %arg8[%c0_17, %c0_18], %21 {strides = array<i32>} : memref<8x128xf32, #tpu.memory_space<vmem>>, vector<8x128xf32>,
    return
  }
  func.func @transform_0(%arg0: i32) -> (i32, i32) {
    %c0_i32 = arith.constant 0 : i32
    %c0_i32_0 = arith.constant 0 : i32
    return %arg0, %c0_i32 : i32, i32
  }
  func.func @transform_1(%arg0: i32) -> (i32, i32) {
    %c0_i32 = arith.constant 0 : i32
    %c0_i32_0 = arith.constant 0 : i32
    %c0_i32_1 = arith.constant 0 : i32
    return %c0_i32, %c0_i32_0 : i32, i32
  }
  func.func @transform_2(%arg0: i32) -> (i32, i32) {
    %c0_i32 = arith.constant 0 : i32
    %c0_i32_0 = arith.constant 0 : i32
    %c0_i32_1 = arith.constant 0 : i32
    return %c0_i32, %c0_i32_0 : i32, i32
  }
  func.func @transform_3(%arg0: i32) -> (i32, i32) {
    %c0_i32 = arith.constant 0 : i32
    %c0_i32_0 = arith.constant 0 : i32
    %c0_i32_1 = arith.constant 0 : i32
    return %c0_i32, %c0_i32_0 : i32, i32
  }
  func.func @transform_4(%arg0: i32) -> (i32, i32) {
    %c0_i32 = arith.constant 0 : i32
    %c0_i32_0 = arith.constant 0 : i32
    %c0_i32_1 = arith.constant 0 : i32
    return %c0_i32, %c0_i32_0 : i32, i32
  }
  func.func @transform_5(%arg0: i32) -> (i32, i32) {
    %c0_i32 = arith.constant 0 : i32
    %c0_i32_0 = arith.constant 0 : i32
    %c0_i32_1 = arith.constant 0 : i32
    return %c0_i32, %c0_i32_0 : i32, i32
  }
  func.func @transform_6(%arg0: i32) -> (i32, i32) {
    %c0_i32 = arith.constant 0 : i32
    %c0_i32_0 = arith.constant 0 : i32
    %c0_i32_1 = arith.constant 0 : i32
    return %c0_i32, %c0_i32_0 : i32, i32
  }
  func.func @transform_7(%arg0: i32) -> (i32, i32) {
    %c0_i32 = arith.constant 0 : i32
    %c0_i32_0 = arith.constant 0 : i32
    return %arg0, %c0_i32 : i32, i32
  }
}

</mosaic_0001>

<llo_original>
// kernel: tpu_custom_call.1
$region0: #{tpu_custom_call.1}
  #allocation0 [shape = 'u32[]', space=smem, size = 0x4, offset = 0x4, fixed_abs, tag = 'smem constant byte address 0x4 - core index']
  #allocation1 [shape = 'u32[144,128]{1,0:T(1,128)}', space=vmem, size = 0x12000, scoped, tag = 'internal scratch']
  %s0 = inlined_call_operand.hbm [shape: bf16[8,384], index: 0, kind: input, shape index: {}]
  %s1 = inlined_call_operand.hbm [shape: bf16[384,256], index: 1, kind: input, shape index: {}]
  %s2 = inlined_call_operand.vmem [shape: f32[1,256], index: 2, kind: input, shape index: {}]
  %s3 = inlined_call_operand.hbm [shape: bf16[256,256], index: 3, kind: input, shape index: {}]
  %s4 = inlined_call_operand.vmem [shape: f32[1,256], index: 4, kind: input, shape index: {}]
  %s5 = inlined_call_operand.hbm [shape: bf16[256,128], index: 5, kind: input, shape index: {}]
  %s6 = inlined_call_operand.vmem [shape: f32[1,128], index: 6, kind: input, shape index: {}]
  %s7 = inlined_call_operand.hbm [shape: f32[8,128], index: 7, kind: output, shape index: {}]
  %s8 = sld [smem:[#allocation0]]
  $region54: #{tpu_custom_call.1} parent=0
    _
  %s10 = ssub.s32 1, %s8
  %s11 = scalar_select 0, %s10, %s8
  $region1: #{tpu_custom_call.1} parent=0
    #allocation2 [shape = 'u8[6144]{0}', space=vmem, size = 0x1800, scoped, tag = 'input window, operand 0, single buffered']
    #allocation3 [shape = 's32[1]{0}', space=sflag, size = 0x4, scoped, tag = 'scoped memory for tpu_custom_call.1']
    #allocation4 [shape = 's32[1]{0}', space=sflag, size = 0x4, scoped, tag = 'scoped memory for tpu_custom_call.1']
    #allocation5 [shape = 'u8[196608]{0}', space=vmem, size = 0x30000, scoped, tag = 'input window, operand 1, single buffered']
    #allocation6 [shape = 's32[1]{0}', space=sflag, size = 0x4, scoped, tag = 'scoped memory for tpu_custom_call.1']
    #allocation7 [shape = 'u8[131072]{0}', space=vmem, size = 0x20000, scoped, tag = 'input window, operand 3, single buffered']
    #allocation8 [shape = 'u8[65536]{0}', space=vmem, size = 0x10000, scoped, tag = 'input window, operand 5, single buffered']
    #allocation9 [shape = 's32[1]{0}', space=sflag, size = 0x4, scoped, tag = 'scoped memory for tpu_custom_call.1']
    #allocation10 [shape = 'u8[4096]{0}', space=vmem, size = 0x1000, scoped, tag = 'output window, operand 0, single buffered']
    %12 = vsyncpa [#allocation3], 0
    %13 = vsyncpa [#allocation6], 0
    %14 = vsyncpa [#allocation9], 0
    %15 = vsyncpa [#allocation4], 0
    // Predicated region
    $region2: #{tpu_custom_call.1} parent=1 // pred_check
      _
    $region3: #{tpu_custom_call.1} parent=1 // pred_check_branch
      %17 = sbr.rel (0) target = $region5
    $region4: #{tpu_custom_call.1} parent=1 // pred_region
      %s19 = ssub.s32 192, 192
      %20 = vsyncadd [#allocation3], %s19
      %s22 = sshll.u32 [#allocation2], 4
      %s23 = int_to_ptr.vmem [resolvable:$true] %s22
      %25 = dma.hbm_to_vmem [thread:$0]  %s0, 192, %s23, [#allocation3]
    $region5: #{tpu_custom_call.1} parent=1 // pred_fallthru
      _
    // Predicated region
    $region6: #{tpu_custom_call.1} parent=1 // pred_check
      _
    $region7: #{tpu_custom_call.1} parent=1 // pred_check_branch
      %27 = sbr.rel (0) target = $region9
    $region8: #{tpu_custom_call.1} parent=1 // pred_region
      %s29 = ssub.s32 6144, 6144
      %30 = vsyncadd [#allocation6], %s29
      %s31 = sshll.u32 [#allocation5], 4
      %s32 = int_to_ptr.vmem [resolvable:$true] %s31
      %37 = dma.hbm_to_vmem [thread:$0]  %s1, 6144, %s32, [#allocation6], 128, 128, 8
    $region9: #{tpu_custom_call.1} parent=1 // pred_fallthru
      _
    // Predicated region
    $region10: #{tpu_custom_call.1} parent=1 // pred_check
      _
    $region11: #{tpu_custom_call.1} parent=1 // pred_check_branch
      %39 = sbr.rel (0) target = $region13
    $region12: #{tpu_custom_call.1} parent=1 // pred_region
      _
    $region13: #{tpu_custom_call.1} parent=1 // pred_fallthru
      _
    // Predicated region
    $region14: #{tpu_custom_call.1} parent=1 // pred_check
      _
    $region15: #{tpu_custom_call.1} parent=1 // pred_check_branch
      %41 = sbr.rel (0) target = $region17
    $region16: #{tpu_custom_call.1} parent=1 // pred_region
      %s43 = ssub.s32 4096, 4096
      %44 = vsyncadd [#allocation6], %s43
      %s45 = sshll.u32 [#allocation7], 4
      %s46 = int_to_ptr.vmem [resolvable:$true] %s45
      %51 = dma.hbm_to_vmem [thread:$0]  %s3, 4096, %s46, [#allocation6], 128, 128, 8
    $region17: #{tpu_custom_call.1} parent=1 // pred_fallthru
      _
    // Predicated region
    $region18: #{tpu_custom_call.1} parent=1 // pred_check
      _
    $region19: #{tpu_custom_call.1} parent=1 // pred_check_branch
      %53 = sbr.rel (0) target = $region21
    $region20: #{tpu_custom_call.1} parent=1 // pred_region
      _
    $region21: #{tpu_custom_call.1} parent=1 // pred_fallthru
      _
    // Predicated region
    $region22: #{tpu_custom_call.1} parent=1 // pred_check
      _
    $region23: #{tpu_custom_call.1} parent=1 // pred_check_branch
      %55 = sbr.rel (0) target = $region25
    $region24: #{tpu_custom_call.1} parent=1 // pred_region
      %s57 = ssub.s32 2048, 2048
      %58 = vsyncadd [#allocation9], %s57
      %s59 = sshll.u32 [#allocation8], 4
      %s60 = int_to_ptr.vmem [resolvable:$true] %s59
      %65 = dma.hbm_to_vmem [thread:$0]  %s5, 2048, %s60, [#allocation9], 64, 64, 4
    $region25: #{tpu_custom_call.1} parent=1 // pred_fallthru
      _
    // Predicated region
    $region26: #{tpu_custom_call.1} parent=1 // pred_check
      _
    $region27: #{tpu_custom_call.1} parent=1 // pred_check_branch
      %67 = sbr.rel (0) target = $region29
    $region28: #{tpu_custom_call.1} parent=1 // pred_region
      _
    $region29: #{tpu_custom_call.1} parent=1 // pred_fallthru
      _
    // Predicated region
    $region30: #{tpu_custom_call.1} parent=1 // pred_check
      _
    $region31: #{tpu_custom_call.1} parent=1 // pred_check_branch
      %69 = sbr.rel (0) target = $region33
    $region32: #{tpu_custom_call.1} parent=1 // pred_region
      %70 = dma.done [#allocation3], 192
    $region33: #{tpu_custom_call.1} parent=1 // pred_fallthru
      _
    // Predicated region
    $region34: #{tpu_custom_call.1} parent=1 // pred_check
      _
    $region35: #{tpu_custom_call.1} parent=1 // pred_check_branch
      %72 = sbr.rel (0) target = $region37
    $region36: #{tpu_custom_call.1} parent=1 // pred_region
      %73 = dma.done [#allocation6], 6144
    $region37: #{tpu_custom_call.1} parent=1 // pred_fallthru
      _
    // Predicated region
    $region38: #{tpu_custom_call.1} parent=1 // pred_check
      _
    $region39: #{tpu_custom_call.1} parent=1 // pred_check_branch
      %75 = sbr.rel (0) target = $region41
    $region40: #{tpu_custom_call.1} parent=1 // pred_region
      %76 = dma.done [#allocation6], 4096
    $region41: #{tpu_custom_call.1} parent=1 // pred_fallthru
      _
    // Predicated region
    $region42: #{tpu_custom_call.1} parent=1 // pred_check
      _
    $region43: #{tpu_custom_call.1} parent=1 // pred_check_branch
      %78 = sbr.rel (0) target = $region45
    $region44: #{tpu_custom_call.1} parent=1 // pred_region
      %79 = dma.done [#allocation9], 2048
    $region45: #{tpu_custom_call.1} parent=1 // pred_fallthru
      _
    %v81 = vld [vmem:[#allocation2] sm:$0xff]
    %v82 = vld [vmem:[#allocation2 + $0x8] sm:$0xf]
    %v83 = vld [vmem:[#allocation5] sm:$0xff]
    %v84 = vld [vmem:[#allocation5 + $0x8] sm:$0xff]
    %v85 = vld [vmem:[#allocation5 + $0x10] sm:$0xff]
    %v86 = vld [vmem:[#allocation5 + $0x18] sm:$0xff]
    %v87 = vld [vmem:[#allocation5 + $0x20] sm:$0xff]
    %v88 = vld [vmem:[#allocation5 + $0x28] sm:$0xff]
    %v89 = vld [vmem:[#allocation5 + $0x30] sm:$0xff]
    %v90 = vld [vmem:[#allocation5 + $0x38] sm:$0xff]
    %v91 = vld [vmem:[#allocation5 + $0x40] sm:$0xff]
    %v92 = vld [vmem:[#allocation5 + $0x48] sm:$0xff]
    %v93 = vld [vmem:[#allocation5 + $0x50] sm:$0xff]
    %v94 = vld [vmem:[#allocation5 + $0x58] sm:$0xff]
    %v95 = vld [vmem:[#allocation5 + $0x60] sm:$0xff]
    %v96 = vld [vmem:[#allocation5 + $0x68] sm:$0xff]
    %v97 = vld [vmem:[#allocation5 + $0x70] sm:$0xff]
    %v98 = vld [vmem:[#allocation5 + $0x78] sm:$0xff]
    %v99 = vld [vmem:[#allocation5 + $0x80] sm:$0xff]
    %v100 = vld [vmem:[#allocation5 + $0x88] sm:$0xff]
    %v101 = vld [vmem:[#allocation5 + $0x90] sm:$0xff]
    %v102 = vld [vmem:[#allocation5 + $0x98] sm:$0xff]
    %v103 = vld [vmem:[#allocation5 + $0xa0] sm:$0xff]
    %v104 = vld [vmem:[#allocation5 + $0xa8] sm:$0xff]
    %v105 = vld [vmem:[#allocation5 + $0xb0] sm:$0xff]
    %v106 = vld [vmem:[#allocation5 + $0xb8] sm:$0xff]
    %v107 = vld [vmem:[#allocation5 + $0xc0] sm:$0xff]
    %v108 = vld [vmem:[#allocation5 + $0xc8] sm:$0xff]
    %v109 = vld [vmem:[#allocation5 + $0xd0] sm:$0xff]
    %v110 = vld [vmem:[#allocation5 + $0xd8] sm:$0xff]
    %v111 = vld [vmem:[#allocation5 + $0xe0] sm:$0xff]
    %v112 = vld [vmem:[#allocation5 + $0xe8] sm:$0xff]
    %v113 = vld [vmem:[#allocation5 + $0xf0] sm:$0xff]
    %v114 = vld [vmem:[#allocation5 + $0xf8] sm:$0xff]
    %v115 = vld [vmem:[#allocation5 + $0x100] sm:$0xff]
    %v116 = vld [vmem:[#allocation5 + $0x108] sm:$0xff]
    %v117 = vld [vmem:[#allocation5 + $0x110] sm:$0xff]
    %v118 = vld [vmem:[#allocation5 + $0x118] sm:$0xff]
    %v119 = vld [vmem:[#allocation5 + $0x120] sm:$0xff]
    %v120 = vld [vmem:[#allocation5 + $0x128] sm:$0xff]
    %v121 = vld [vmem:[#allocation5 + $0x130] sm:$0xff]
    %v122 = vld [vmem:[#allocation5 + $0x138] sm:$0xff]
    %v123 = vld [vmem:[#allocation5 + $0x140] sm:$0xff]
    %v124 = vld [vmem:[#allocation5 + $0x148] sm:$0xff]
    %v125 = vld [vmem:[#allocation5 + $0x150] sm:$0xff]
    %v126 = vld [vmem:[#allocation5 + $0x158] sm:$0xff]
    %v127 = vld [vmem:[#allocation5 + $0x160] sm:$0xff]
    %v128 = vld [vmem:[#allocation5 + $0x168] sm:$0xff]
    %v129 = vld [vmem:[#allocation5 + $0x170] sm:$0xff]
    %v130 = vld [vmem:[#allocation5 + $0x178] sm:$0xff]
    %v131 = vld [vmem:[%s2] sm:$0x3]
    %v133 = vlaneseq
    %v134 = vshrl.u32 %v133, 7
    %v135 = vsub.s32 0, %v134
    %v136 = vrot.slane %v131, %v135
    %v137 = vlaneseq
    %v138 = vshrl.u32 %v137, 7
    %v139 = vsub.s32 1, %v138
    %v140 = vrot.slane %v131, %v139
    %v145 = vunpack.c.l.b16 %v81
    %v146 = vunpack.c.h.b16 %v81
    %v147 = vunpack.c.l.b16 %v82
    %v148 = vpack.c.b16 %v145, %v145
    %v149 = vpack.c.b16 %v146, %v146
    %v150 = vpack.c.b16 %v147, %v147
    %v202 = vunpack.c.l.b16 %v83
    %v203 = vunpack.c.h.b16 %v83
    %v204 = vunpack.c.l.b16 %v84
    %v205 = vunpack.c.h.b16 %v84
    %v206 = vunpack.c.l.b16 %v85
    %v207 = vunpack.c.h.b16 %v85
    %v208 = vunpack.c.l.b16 %v86
    %v209 = vunpack.c.h.b16 %v86
    %v210 = vunpack.c.l.b16 %v87
    %v211 = vunpack.c.h.b16 %v87
    %v212 = vunpack.c.l.b16 %v88
    %v213 = vunpack.c.h.b16 %v88
    %v214 = vunpack.c.l.b16 %v89
    %v215 = vunpack.c.h.b16 %v89
    %v216 = vunpack.c.l.b16 %v90
    %v217 = vunpack.c.h.b16 %v90
    %v218 = vunpack.c.l.b16 %v91
    %v219 = vunpack.c.h.b16 %v91
    %v220 = vunpack.c.l.b16 %v92
    %v221 = vunpack.c.h.b16 %v92
    %v222 = vunpack.c.l.b16 %v93
    %v223 = vunpack.c.h.b16 %v93
    %v224 = vunpack.c.l.b16 %v94
    %v225 = vunpack.c.h.b16 %v94
    %v226 = vunpack.c.l.b16 %v95
    %v227 = vunpack.c.h.b16 %v95
    %v228 = vunpack.c.l.b16 %v96
    %v229 = vunpack.c.h.b16 %v96
    %v230 = vunpack.c.l.b16 %v97
    %v231 = vunpack.c.h.b16 %v97
    %v232 = vunpack.c.l.b16 %v98
    %v233 = vunpack.c.h.b16 %v98
    %v234 = vunpack.c.l.b16 %v99
    %v235 = vunpack.c.h.b16 %v99
    %v236 = vunpack.c.l.b16 %v100
    %v237 = vunpack.c.h.b16 %v100
    %v238 = vunpack.c.l.b16 %v101
    %v239 = vunpack.c.h.b16 %v101
    %v240 = vunpack.c.l.b16 %v102
    %v241 = vunpack.c.h.b16 %v102
    %v242 = vunpack.c.l.b16 %v103
    %v243 = vunpack.c.h.b16 %v103
    %v244 = vunpack.c.l.b16 %v104
    %v245 = vunpack.c.h.b16 %v104
    %v246 = vunpack.c.l.b16 %v105
    %v247 = vunpack.c.h.b16 %v105
    %v248 = vunpack.c.l.b16 %v106
    %v249 = vunpack.c.h.b16 %v106
    %v250 = vunpack.c.l.b16 %v107
    %v251 = vunpack.c.h.b16 %v107
    %v252 = vunpack.c.l.b16 %v108
    %v253 = vunpack.c.h.b16 %v108
    %v254 = vunpack.c.l.b16 %v109
    %v255 = vunpack.c.h.b16 %v109
    %v256 = vunpack.c.l.b16 %v110
    %v257 = vunpack.c.h.b16 %v110
    %v258 = vunpack.c.l.b16 %v111
    %v259 = vunpack.c.h.b16 %v111
    %v260 = vunpack.c.l.b16 %v112
    %v261 = vunpack.c.h.b16 %v112
    %v262 = vunpack.c.l.b16 %v113
    %v263 = vunpack.c.h.b16 %v113
    %v264 = vunpack.c.l.b16 %v114
    %v265 = vunpack.c.h.b16 %v114
    %v266 = vunpack.c.l.b16 %v115
    %v267 = vunpack.c.h.b16 %v115
    %v268 = vunpack.c.l.b16 %v116
    %v269 = vunpack.c.h.b16 %v116
    %v270 = vunpack.c.l.b16 %v117
    %v271 = vunpack.c.h.b16 %v117
    %v272 = vunpack.c.l.b16 %v118
    %v273 = vunpack.c.h.b16 %v118
    %v274 = vunpack.c.l.b16 %v119
    %v275 = vunpack.c.h.b16 %v119
    %v276 = vunpack.c.l.b16 %v120
    %v277 = vunpack.c.h.b16 %v120
    %v278 = vunpack.c.l.b16 %v121
    %v279 = vunpack.c.h.b16 %v121
    %v280 = vunpack.c.l.b16 %v122
    %v281 = vunpack.c.h.b16 %v122
    %v282 = vunpack.c.l.b16 %v123
    %v283 = vunpack.c.h.b16 %v123
    %v284 = vunpack.c.l.b16 %v124
    %v285 = vunpack.c.h.b16 %v124
    %v286 = vunpack.c.l.b16 %v125
    %v287 = vunpack.c.h.b16 %v125
    %v288 = vunpack.c.l.b16 %v126
    %v289 = vunpack.c.h.b16 %v126
    %v290 = vunpack.c.l.b16 %v127
    %v291 = vunpack.c.h.b16 %v127
    %v292 = vunpack.c.l.b16 %v128
    %v293 = vunpack.c.h.b16 %v128
    %v294 = vunpack.c.l.b16 %v129
    %v295 = vunpack.c.h.b16 %v129
    %v296 = vunpack.c.l.b16 %v130
    %v297 = vunpack.c.h.b16 %v130
    %v298 = vpack.c.b16 %v204, %v202
    %v299 = vpack.c.b16 %v205, %v203
    %v300 = vpack.c.b16 %v208, %v206
    %v301 = vpack.c.b16 %v209, %v207
    %v302 = vpack.c.b16 %v212, %v210
    %v303 = vpack.c.b16 %v213, %v211
    %v304 = vpack.c.b16 %v216, %v214
    %v305 = vpack.c.b16 %v217, %v215
    %v306 = vpack.c.b16 %v220, %v218
    %v307 = vpack.c.b16 %v221, %v219
    %v308 = vpack.c.b16 %v224, %v222
    %v309 = vpack.c.b16 %v225, %v223
    %v310 = vpack.c.b16 %v228, %v226
    %v311 = vpack.c.b16 %v229, %v227
    %v312 = vpack.c.b16 %v232, %v230
    %v313 = vpack.c.b16 %v233, %v231
    %v314 = vpack.c.b16 %v236, %v234
    %v315 = vpack.c.b16 %v237, %v235
    %v316 = vpack.c.b16 %v240, %v238
    %v317 = vpack.c.b16 %v241, %v239
    %v318 = vpack.c.b16 %v244, %v242
    %v319 = vpack.c.b16 %v245, %v243
    %v320 = vpack.c.b16 %v248, %v246
    %v321 = vpack.c.b16 %v249, %v247
    %v322 = vpack.c.b16 %v252, %v250
    %v323 = vpack.c.b16 %v253, %v251
    %v324 = vpack.c.b16 %v256, %v254
    %v325 = vpack.c.b16 %v257, %v255
    %v326 = vpack.c.b16 %v260, %v258
    %v327 = vpack.c.b16 %v261, %v259
    %v328 = vpack.c.b16 %v264, %v262
    %v329 = vpack.c.b16 %v265, %v263
    %v330 = vpack.c.b16 %v268, %v266
    %v331 = vpack.c.b16 %v269, %v267
    %v332 = vpack.c.b16 %v272, %v270
    %v333 = vpack.c.b16 %v273, %v271
    %v334 = vpack.c.b16 %v276, %v274
    %v335 = vpack.c.b16 %v277, %v275
    %v336 = vpack.c.b16 %v280, %v278
    %v337 = vpack.c.b16 %v281, %v279
    %v338 = vpack.c.b16 %v284, %v282
    %v339 = vpack.c.b16 %v285, %v283
    %v340 = vpack.c.b16 %v288, %v286
    %v341 = vpack.c.b16 %v289, %v287
    %v342 = vpack.c.b16 %v292, %v290
    %v343 = vpack.c.b16 %v293, %v291
    %v344 = vpack.c.b16 %v296, %v294
    %v345 = vpack.c.b16 %v297, %v295
    %394 = vmatprep.subr.bf16.mxu0 %v299
    %395 = vmatpush1.bf16.msra.mxu0 %v298
    %396 = vmatprep.subr.bf16.mxu0 %v301
    %397 = vmatpush1.bf16.msra.mxu0 %v300
    %398 = vmatprep.subr.bf16.mxu0 %v303
    %399 = vmatpush1.bf16.msra.mxu0 %v302
    %400 = vmatprep.subr.bf16.mxu0 %v305
    %401 = vmatpush1.bf16.msra.mxu0 %v304
    %402 = vmatprep.subr.bf16.mxu0 %v307
    %403 = vmatpush1.bf16.msra.mxu0 %v306
    %404 = vmatprep.subr.bf16.mxu0 %v309
    %405 = vmatpush1.bf16.msra.mxu0 %v308
    %406 = vmatprep.subr.bf16.mxu0 %v311
    %407 = vmatpush1.bf16.msra.mxu0 %v310
    %408 = vmatprep.subr.bf16.mxu0 %v313
    %409 = vmatpush1.bf16.msra.mxu0 %v312
    %410 = vmatprep.subr.bf16.mxu0 %v315
    %411 = vmatpush1.bf16.msra.mxu0 %v314
    %412 = vmatprep.subr.bf16.mxu0 %v317
    %413 = vmatpush1.bf16.msra.mxu0 %v316
    %414 = vmatprep.subr.bf16.mxu0 %v319
    %415 = vmatpush1.bf16.msra.mxu0 %v318
    %416 = vmatprep.subr.bf16.mxu0 %v321
    %417 = vmatpush1.bf16.msra.mxu0 %v320
    %418 = vmatprep.subr.bf16.mxu0 %v323
    %419 = vmatpush1.bf16.msra.mxu0 %v322
    %420 = vmatprep.subr.bf16.mxu0 %v325
    %421 = vmatpush1.bf16.msra.mxu0 %v324
    %422 = vmatprep.subr.bf16.mxu0 %v327
    %423 = vmatpush1.bf16.msra.mxu0 %v326
    %424 = vmatprep.subr.bf16.mxu0 %v329
    %425 = vmatpush1.bf16.msra.mxu0 %v328
    %426 = vmatprep.mubr.bf16.mxu0 %v149
    %427 = vmatmul.mubr.bf16.gmra.mrb[0].mxu0 %v148
    %v428 = vpop.f32.mrb[0].mxu0
    %v429 = vadd.f32 %v136, %v428
    %v430 = vpop.f32.mrb[0].mxu0
    %v431 = vadd.f32 %v140, %v430
    %v432 = vpop.f32.mrb[0].mxu0
    %v433 = vpop.f32.mrb[0].mxu0
    %434 = vdwg.mxu0
    %435 = vmatprep.subr.bf16.mxu0 %v331
    %436 = vmatpush1.bf16.msra.mxu0 %v330
    %437 = vmatprep.subr.bf16.mxu0 %v333
    %438 = vmatpush1.bf16.msra.mxu0 %v332
    %439 = vmatprep.subr.bf16.mxu0 %v335
    %440 = vmatpush1.bf16.msra.mxu0 %v334
    %441 = vmatprep.subr.bf16.mxu0 %v337
    %442 = vmatpush1.bf16.msra.mxu0 %v336
    %443 = vmatprep.subr.bf16.mxu0 %v339
    %444 = vmatpush1.bf16.msra.mxu0 %v338
    %445 = vmatprep.subr.bf16.mxu0 %v341
    %446 = vmatpush1.bf16.msra.mxu0 %v340
    %447 = vmatprep.subr.bf16.mxu0 %v343
    %448 = vmatpush1.bf16.msra.mxu0 %v342
    %449 = vmatprep.subr.bf16.mxu0 %v345
    %450 = vmatpush1.bf16.msra.mxu0 %v344
    %451 = vmatprep.subr.bf16.mxu0 0
    %452 = vmatpush1.bf16.msra.mxu0 0
    %453 = vmatprep.subr.bf16.mxu0 0
    %454 = vmatpush1.bf16.msra.mxu0 0
    %455 = vmatprep.subr.bf16.mxu0 0
    %456 = vmatpush1.bf16.msra.mxu0 0
    %457 = vmatprep.subr.bf16.mxu0 0
    %458 = vmatpush1.bf16.msra.mxu0 0
    %459 = vmatprep.subr.bf16.mxu0 0
    %460 = vmatpush1.bf16.msra.mxu0 0
    %461 = vmatprep.subr.bf16.mxu0 0
    %462 = vmatpush1.bf16.msra.mxu0 0
    %463 = vmatprep.subr.bf16.mxu0 0
    %464 = vmatpush1.bf16.msra.mxu0 0
    %465 = vmatprep.subr.bf16.mxu0 0
    %466 = vmatpush1.bf16.msra.mxu0 0
    %467 = vmatprep.mubr.bf16.mxu0 0
    %468 = vmatmul.mubr.bf16.gmra.mrb[0].mxu0 %v150
    %v469 = vpop.f32.mrb[0].mxu0
    %v470 = vadd.f32 %v429, %v469
    %v471 = vpop.f32.mrb[0].mxu0
    %v472 = vadd.f32 %v431, %v471
    %v473 = vpop.f32.mrb[0].mxu0
    %v474 = vpop.f32.mrb[0].mxu0
    %475 = vdwg.mxu0
    %v476 = vmax.f32 %v470, 0.0
    %v477 = vmax.f32 %v472, 0.0
    %v478 = vpack.c.bf16 %v476, %v476
    %v479 = vpack.c.bf16 %v477, %v477
    %v480 = vld [vmem:[#allocation7] sm:$0xff]
    %v481 = vld [vmem:[#allocation7 + $0x8] sm:$0xff]
    %v482 = vld [vmem:[#allocation7 + $0x10] sm:$0xff]
    %v483 = vld [vmem:[#allocation7 + $0x18] sm:$0xff]
    %v484 = vld [vmem:[#allocation7 + $0x20] sm:$0xff]
    %v485 = vld [vmem:[#allocation7 + $0x28] sm:$0xff]
    %v486 = vld [vmem:[#allocation7 + $0x30] sm:$0xff]
    %v487 = vld [vmem:[#allocation7 + $0x38] sm:$0xff]
    %v488 = vld [vmem:[#allocation7 + $0x40] sm:$0xff]
    %v489 = vld [vmem:[#allocation7 + $0x48] sm:$0xff]
    %v490 = vld [vmem:[#allocation7 + $0x50] sm:$0xff]
    %v491 = vld [vmem:[#allocation7 + $0x58] sm:$0xff]
    %v492 = vld [vmem:[#allocation7 + $0x60] sm:$0xff]
    %v493 = vld [vmem:[#allocation7 + $0x68] sm:$0xff]
    %v494 = vld [vmem:[#allocation7 + $0x70] sm:$0xff]
    %v495 = vld [vmem:[#allocation7 + $0x78] sm:$0xff]
    %v496 = vld [vmem:[#allocation7 + $0x80] sm:$0xff]
    %v497 = vld [vmem:[#allocation7 + $0x88] sm:$0xff]
    %v498 = vld [vmem:[#allocation7 + $0x90] sm:$0xff]
    %v499 = vld [vmem:[#allocation7 + $0x98] sm:$0xff]
    %v500 = vld [vmem:[#allocation7 + $0xa0] sm:$0xff]
    %v501 = vld [vmem:[#allocation7 + $0xa8] sm:$0xff]
    %v502 = vld [vmem:[#allocation7 + $0xb0] sm:$0xff]
    %v503 = vld [vmem:[#allocation7 + $0xb8] sm:$0xff]
    %v504 = vld [vmem:[#allocation7 + $0xc0] sm:$0xff]
    %v505 = vld [vmem:[#allocation7 + $0xc8] sm:$0xff]
    %v506 = vld [vmem:[#allocation7 + $0xd0] sm:$0xff]
    %v507 = vld [vmem:[#allocation7 + $0xd8] sm:$0xff]
    %v508 = vld [vmem:[#allocation7 + $0xe0] sm:$0xff]
    %v509 = vld [vmem:[#allocation7 + $0xe8] sm:$0xff]
    %v510 = vld [vmem:[#allocation7 + $0xf0] sm:$0xff]
    %v511 = vld [vmem:[#allocation7 + $0xf8] sm:$0xff]
    %v512 = vld [vmem:[%s4] sm:$0x3]
    %v514 = vlaneseq
    %v515 = vshrl.u32 %v514, 7
    %v516 = vsub.s32 0, %v515
    %v517 = vrot.slane %v512, %v516
    %v518 = vlaneseq
    %v519 = vshrl.u32 %v518, 7
    %v520 = vsub.s32 1, %v519
    %v521 = vrot.slane %v512, %v520
    %v556 = vunpack.c.l.b16 %v480
    %v557 = vunpack.c.h.b16 %v480
    %v558 = vunpack.c.l.b16 %v481
    %v559 = vunpack.c.h.b16 %v481
    %v560 = vunpack.c.l.b16 %v482
    %v561 = vunpack.c.h.b16 %v482
    %v562 = vunpack.c.l.b16 %v483
    %v563 = vunpack.c.h.b16 %v483
    %v564 = vunpack.c.l.b16 %v484
    %v565 = vunpack.c.h.b16 %v484
    %v566 = vunpack.c.l.b16 %v485
    %v567 = vunpack.c.h.b16 %v485
    %v568 = vunpack.c.l.b16 %v486
    %v569 = vunpack.c.h.b16 %v486
    %v570 = vunpack.c.l.b16 %v487
    %v571 = vunpack.c.h.b16 %v487
    %v572 = vunpack.c.l.b16 %v488
    %v573 = vunpack.c.h.b16 %v488
    %v574 = vunpack.c.l.b16 %v489
    %v575 = vunpack.c.h.b16 %v489
    %v576 = vunpack.c.l.b16 %v490
    %v577 = vunpack.c.h.b16 %v490
    %v578 = vunpack.c.l.b16 %v491
    %v579 = vunpack.c.h.b16 %v491
    %v580 = vunpack.c.l.b16 %v492
    %v581 = vunpack.c.h.b16 %v492
    %v582 = vunpack.c.l.b16 %v493
    %v583 = vunpack.c.h.b16 %v493
    %v584 = vunpack.c.l.b16 %v494
    %v585 = vunpack.c.h.b16 %v494
    %v586 = vunpack.c.l.b16 %v495
    %v587 = vunpack.c.h.b16 %v495
    %v588 = vunpack.c.l.b16 %v496
    %v589 = vunpack.c.h.b16 %v496
    %v590 = vunpack.c.l.b16 %v497
    %v591 = vunpack.c.h.b16 %v497
    %v592 = vunpack.c.l.b16 %v498
    %v593 = vunpack.c.h.b16 %v498
    %v594 = vunpack.c.l.b16 %v499
    %v595 = vunpack.c.h.b16 %v499
    %v596 = vunpack.c.l.b16 %v500
    %v597 = vunpack.c.h.b16 %v500
    %v598 = vunpack.c.l.b16 %v501
    %v599 = vunpack.c.h.b16 %v501
    %v600 = vunpack.c.l.b16 %v502
    %v601 = vunpack.c.h.b16 %v502
    %v602 = vunpack.c.l.b16 %v503
    %v603 = vunpack.c.h.b16 %v503
    %v604 = vunpack.c.l.b16 %v504
    %v605 = vunpack.c.h.b16 %v504
    %v606 = vunpack.c.l.b16 %v505
    %v607 = vunpack.c.h.b16 %v505
    %v608 = vunpack.c.l.b16 %v506
    %v609 = vunpack.c.h.b16 %v506
    %v610 = vunpack.c.l.b16 %v507
    %v611 = vunpack.c.h.b16 %v507
    %v612 = vunpack.c.l.b16 %v508
    %v613 = vunpack.c.h.b16 %v508
    %v614 = vunpack.c.l.b16 %v509
    %v615 = vunpack.c.h.b16 %v509
    %v616 = vunpack.c.l.b16 %v510
    %v617 = vunpack.c.h.b16 %v510
    %v618 = vunpack.c.l.b16 %v511
    %v619 = vunpack.c.h.b16 %v511
    %v620 = vpack.c.b16 %v558, %v556
    %v621 = vpack.c.b16 %v559, %v557
    %v622 = vpack.c.b16 %v562, %v560
    %v623 = vpack.c.b16 %v563, %v561
    %v624 = vpack.c.b16 %v566, %v564
    %v625 = vpack.c.b16 %v567, %v565
    %v626 = vpack.c.b16 %v570, %v568
    %v627 = vpack.c.b16 %v571, %v569
    %v628 = vpack.c.b16 %v574, %v572
    %v629 = vpack.c.b16 %v575, %v573
    %v630 = vpack.c.b16 %v578, %v576
    %v631 = vpack.c.b16 %v579, %v577
    %v632 = vpack.c.b16 %v582, %v580
    %v633 = vpack.c.b16 %v583, %v581
    %v634 = vpack.c.b16 %v586, %v584
    %v635 = vpack.c.b16 %v587, %v585
    %v636 = vpack.c.b16 %v590, %v588
    %v637 = vpack.c.b16 %v591, %v589
    %v638 = vpack.c.b16 %v594, %v592
    %v639 = vpack.c.b16 %v595, %v593
    %v640 = vpack.c.b16 %v598, %v596
    %v641 = vpack.c.b16 %v599, %v597
    %v642 = vpack.c.b16 %v602, %v600
    %v643 = vpack.c.b16 %v603, %v601
    %v644 = vpack.c.b16 %v606, %v604
    %v645 = vpack.c.b16 %v607, %v605
    %v646 = vpack.c.b16 %v610, %v608
    %v647 = vpack.c.b16 %v611, %v609
    %v648 = vpack.c.b16 %v614, %v612
    %v649 = vpack.c.b16 %v615, %v613
    %v650 = vpack.c.b16 %v618, %v616
    %v651 = vpack.c.b16 %v619, %v617
    %684 = vmatprep.subr.bf16.mxu0 %v621
    %685 = vmatpush1.bf16.msra.mxu0 %v620
    %686 = vmatprep.subr.bf16.mxu0 %v623
    %687 = vmatpush1.bf16.msra.mxu0 %v622
    %688 = vmatprep.subr.bf16.mxu0 %v625
    %689 = vmatpush1.bf16.msra.mxu0 %v624
    %690 = vmatprep.subr.bf16.mxu0 %v627
    %691 = vmatpush1.bf16.msra.mxu0 %v626
    %692 = vmatprep.subr.bf16.mxu0 %v629
    %693 = vmatpush1.bf16.msra.mxu0 %v628
    %694 = vmatprep.subr.bf16.mxu0 %v631
    %695 = vmatpush1.bf16.msra.mxu0 %v630
    %696 = vmatprep.subr.bf16.mxu0 %v633
    %697 = vmatpush1.bf16.msra.mxu0 %v632
    %698 = vmatprep.subr.bf16.mxu0 %v635
    %699 = vmatpush1.bf16.msra.mxu0 %v634
    %700 = vmatprep.subr.bf16.mxu0 %v637
    %701 = vmatpush1.bf16.msra.mxu0 %v636
    %702 = vmatprep.subr.bf16.mxu0 %v639
    %703 = vmatpush1.bf16.msra.mxu0 %v638
    %704 = vmatprep.subr.bf16.mxu0 %v641
    %705 = vmatpush1.bf16.msra.mxu0 %v640
    %706 = vmatprep.subr.bf16.mxu0 %v643
    %707 = vmatpush1.bf16.msra.mxu0 %v642
    %708 = vmatprep.subr.bf16.mxu0 %v645
    %709 = vmatpush1.bf16.msra.mxu0 %v644
    %710 = vmatprep.subr.bf16.mxu0 %v647
    %711 = vmatpush1.bf16.msra.mxu0 %v646
    %712 = vmatprep.subr.bf16.mxu0 %v649
    %713 = vmatpush1.bf16.msra.mxu0 %v648
    %714 = vmatprep.subr.bf16.mxu0 %v651
    %715 = vmatpush1.bf16.msra.mxu0 %v650
    %716 = vmatprep.mubr.bf16.mxu0 %v479
    %717 = vmatmul.mubr.bf16.gmra.mrb[0].mxu0 %v478
    %v718 = vpop.f32.mrb[0].mxu0
    %v719 = vadd.f32 %v517, %v718
    %v720 = vpop.f32.mrb[0].mxu0
    %v721 = vadd.f32 %v521, %v720
    %v722 = vpop.f32.mrb[0].mxu0
    %v723 = vpop.f32.mrb[0].mxu0
    %724 = vdwg.mxu0
    %v725 = vmax.f32 %v719, 0.0
    %v726 = vmax.f32 %v721, 0.0
    %v727 = vpack.c.bf16 %v725, %v725
    %v728 = vpack.c.bf16 %v726, %v726
    %v729 = vld [vmem:[#allocation8] sm:$0xf]
    %v730 = vld [vmem:[#allocation8 + $0x4] sm:$0xf]
    %v731 = vld [vmem:[#allocation8 + $0x8] sm:$0xf]
    %v732 = vld [vmem:[#allocation8 + $0xc] sm:$0xf]
    %v733 = vld [vmem:[#allocation8 + $0x10] sm:$0xf]
    %v734 = vld [vmem:[#allocation8 + $0x14] sm:$0xf]
    %v735 = vld [vmem:[#allocation8 + $0x18] sm:$0xf]
    %v736 = vld [vmem:[#allocation8 + $0x1c] sm:$0xf]
    %v737 = vld [vmem:[#allocation8 + $0x20] sm:$0xf]
    %v738 = vld [vmem:[#allocation8 + $0x24] sm:$0xf]
    %v739 = vld [vmem:[#allocation8 + $0x28] sm:$0xf]
    %v740 = vld [vmem:[#allocation8 + $0x2c] sm:$0xf]
    %v741 = vld [vmem:[#allocation8 + $0x30] sm:$0xf]
    %v742 = vld [vmem:[#allocation8 + $0x34] sm:$0xf]
    %v743 = vld [vmem:[#allocation8 + $0x38] sm:$0xf]
    %v744 = vld [vmem:[#allocation8 + $0x3c] sm:$0xf]
    %v745 = vld [vmem:[#allocation8 + $0x40] sm:$0xf]
    %v746 = vld [vmem:[#allocation8 + $0x44] sm:$0xf]
    %v747 = vld [vmem:[#allocation8 + $0x48] sm:$0xf]
    %v748 = vld [vmem:[#allocation8 + $0x4c] sm:$0xf]
    %v749 = vld [vmem:[#allocation8 + $0x50] sm:$0xf]
    %v750 = vld [vmem:[#allocation8 + $0x54] sm:$0xf]
    %v751 = vld [vmem:[#allocation8 + $0x58] sm:$0xf]
    %v752 = vld [vmem:[#allocation8 + $0x5c] sm:$0xf]
    %v753 = vld [vmem:[#allocation8 + $0x60] sm:$0xf]
    %v754 = vld [vmem:[#allocation8 + $0x64] sm:$0xf]
    %v755 = vld [vmem:[#allocation8 + $0x68] sm:$0xf]
    %v756 = vld [vmem:[#allocation8 + $0x6c] sm:$0xf]
    %v757 = vld [vmem:[#allocation8 + $0x70] sm:$0xf]
    %v758 = vld [vmem:[#allocation8 + $0x74] sm:$0xf]
    %v759 = vld [vmem:[#allocation8 + $0x78] sm:$0xf]
    %v760 = vld [vmem:[#allocation8 + $0x7c] sm:$0xf]
    %v761 = vld [vmem:[%s6] sm:$0x1]
    %v763 = vlaneseq
    %v764 = vshrl.u32 %v763, 7
    %v765 = vsub.s32 0, %v764
    %v766 = vrot.slane %v761, %v765
    %v800 = vunpack.c.l.b16 %v729
    %v801 = vunpack.c.l.b16 %v730
    %v802 = vunpack.c.l.b16 %v731
    %v803 = vunpack.c.l.b16 %v732
    %v804 = vunpack.c.l.b16 %v733
    %v805 = vunpack.c.l.b16 %v734
    %v806 = vunpack.c.l.b16 %v735
    %v807 = vunpack.c.l.b16 %v736
    %v808 = vunpack.c.l.b16 %v737
    %v809 = vunpack.c.l.b16 %v738
    %v810 = vunpack.c.l.b16 %v739
    %v811 = vunpack.c.l.b16 %v740
    %v812 = vunpack.c.l.b16 %v741
    %v813 = vunpack.c.l.b16 %v742
    %v814 = vunpack.c.l.b16 %v743
    %v815 = vunpack.c.l.b16 %v744
    %v816 = vunpack.c.l.b16 %v745
    %v817 = vunpack.c.l.b16 %v746
    %v818 = vunpack.c.l.b16 %v747
    %v819 = vunpack.c.l.b16 %v748
    %v820 = vunpack.c.l.b16 %v749
    %v821 = vunpack.c.l.b16 %v750
    %v822 = vunpack.c.l.b16 %v751
    %v823 = vunpack.c.l.b16 %v752
    %v824 = vunpack.c.l.b16 %v753
    %v825 = vunpack.c.l.b16 %v754
    %v826 = vunpack.c.l.b16 %v755
    %v827 = vunpack.c.l.b16 %v756
    %v828 = vunpack.c.l.b16 %v757
    %v829 = vunpack.c.l.b16 %v758
    %v830 = vunpack.c.l.b16 %v759
    %v831 = vunpack.c.l.b16 %v760
    %v832 = vpack.c.b16 %v801, %v800
    %v833 = vpack.c.b16 %v803, %v802
    %v834 = vpack.c.b16 %v805, %v804
    %v835 = vpack.c.b16 %v807, %v806
    %v836 = vpack.c.b16 %v809, %v808
    %v837 = vpack.c.b16 %v811, %v810
    %v838 = vpack.c.b16 %v813, %v812
    %v839 = vpack.c.b16 %v815, %v814
    %v840 = vpack.c.b16 %v817, %v816
    %v841 = vpack.c.b16 %v819, %v818
    %v842 = vpack.c.b16 %v821, %v820
    %v843 = vpack.c.b16 %v823, %v822
    %v844 = vpack.c.b16 %v825, %v824
    %v845 = vpack.c.b16 %v827, %v826
    %v846 = vpack.c.b16 %v829, %v828
    %v847 = vpack.c.b16 %v831, %v830
    %864 = vmatprep.subr.bf16.mxu0 0
    %865 = vmatpush1.bf16.msra.mxu0 %v832
    %866 = vmatprep.subr.bf16.mxu0 0
    %867 = vmatpush1.bf16.msra.mxu0 %v833
    %868 = vmatprep.subr.bf16.mxu0 0
    %869 = vmatpush1.bf16.msra.mxu0 %v834
    %870 = vmatprep.subr.bf16.mxu0 0
    %871 = vmatpush1.bf16.msra.mxu0 %v835
    %872 = vmatprep.subr.bf16.mxu0 0
    %873 = vmatpush1.bf16.msra.mxu0 %v836
    %874 = vmatprep.subr.bf16.mxu0 0
    %875 = vmatpush1.bf16.msra.mxu0 %v837
    %876 = vmatprep.subr.bf16.mxu0 0
    %877 = vmatpush1.bf16.msra.mxu0 %v838
    %878 = vmatprep.subr.bf16.mxu0 0
    %879 = vmatpush1.bf16.msra.mxu0 %v839
    %880 = vmatprep.subr.bf16.mxu0 0
    %881 = vmatpush1.bf16.msra.mxu0 %v840
    %882 = vmatprep.subr.bf16.mxu0 0
    %883 = vmatpush1.bf16.msra.mxu0 %v841
    %884 = vmatprep.subr.bf16.mxu0 0
    %885 = vmatpush1.bf16.msra.mxu0 %v842
    %886 = vmatprep.subr.bf16.mxu0 0
    %887 = vmatpush1.bf16.msra.mxu0 %v843
    %888 = vmatprep.subr.bf16.mxu0 0
    %889 = vmatpush1.bf16.msra.mxu0 %v844
    %890 = vmatprep.subr.bf16.mxu0 0
    %891 = vmatpush1.bf16.msra.mxu0 %v845
    %892 = vmatprep.subr.bf16.mxu0 0
    %893 = vmatpush1.bf16.msra.mxu0 %v846
    %894 = vmatprep.subr.bf16.mxu0 0
    %895 = vmatpush1.bf16.msra.mxu0 %v847
    %896 = vmatprep.mubr.bf16.mxu0 %v728
    %897 = vmatmul.mubr.bf16.gmra.mrb[0].mxu0 %v727
    %v898 = vpop.f32.mrb[0].mxu0
    %v899 = vadd.f32 %v766, %v898
    %v900 = vpop.f32.mrb[0].mxu0
    %v901 = vpop.f32.mrb[0].mxu0
    %v902 = vpop.f32.mrb[0].mxu0
    %903 = vdwg.mxu0
    %904 = vst [vmem:[#allocation10] sm:$0xff] %v899
    // Predicated region
    $region46: #{tpu_custom_call.1} parent=1 // pred_check
      _
    $region47: #{tpu_custom_call.1} parent=1 // pred_check_branch
      %906 = sbr.rel (0) target = $region49
    $region48: #{tpu_custom_call.1} parent=1 // pred_region
      %s908 = ssub.s32 128, 128
      %909 = vsyncadd [#allocation4], %s908
      %s911 = sshll.u32 [#allocation10], 4
      %s912 = int_to_ptr.vmem [resolvable:$true] %s911
      %914 = dma.vmem_to_hbm [thread:$0]  %s912, 128, %s7, [#allocation4]
    $region49: #{tpu_custom_call.1} parent=1 // pred_fallthru
      _
    // Predicated region
    $region50: #{tpu_custom_call.1} parent=1 // pred_check
      _
    $region51: #{tpu_custom_call.1} parent=1 // pred_check_branch
      %916 = sbr.rel (0) target = $region53
    $region52: #{tpu_custom_call.1} parent=1 // pred_region
      %917 = dma.done [#allocation4], 128
    $region53: #{tpu_custom_call.1} parent=1 // pred_fallthru
      _
    %918 = vsyncpa [#allocation3], 1
    %919 = vsyncpa [#allocation6], 1
    %920 = vsyncpa [#allocation9], 1
    %921 = vsyncpa [#allocation4], 1

</llo_original>
